<compile_context>
chip_gen: v7x
topology: tpu7x:2x2x1
jax: 0.10.0
libtpu: 0.0.40
codegen_flags: <defaults>
</compile_context>

<pallas_src>
import jax
import jax.numpy as jnp
from jax.experimental import pallas as pl
from jax.experimental.pallas import tpu as pltpu


def _round_up(x: int, m: int) -> int:
    return ((x + m - 1) // m) * m


def _linear_kernel(x_ref, wt_ref, b_ref, o_ref):
    """One (tm, N) output tile: o = x @ W^T + b.

    x / W^T are bf16 (native MXU dtype); accumulate, bias add and the
    lane-dense store are f32.  K is whole, so there is no reduction grid axis
    and no accumulator scratch.
    """
    acc = jnp.dot(x_ref[...], wt_ref[...], preferred_element_type=jnp.float32)
    o_ref[...] = (acc + b_ref[...]).astype(o_ref.dtype)


def pallas_linear(x, wt, b2, *, min_split_m=256, big_tile_m=512):
    """y = x @ wt + b2 via a single Pallas GEMM.

    x:  (M, K) bfloat16   activations
    wt: (K, N) bfloat16   pre-transposed weight (cached at init)
    b2: (1, N) float32    bias row (cached at init)
    -> y: (M, N) float32
    """
    M, K = x.shape
    K2, N = wt.shape
    assert K == K2

    if M < min_split_m:
        # Tiny problem: single grid step, whole GEMM in one MXU pass.
        tm = _round_up(M, 16)
    else:
        # >= 2 parallel M tiles so both v7x TensorCores get work; 512-row
        # tiles keep the ~0.35us per-step overhead well under the DMA time.
        tm = min(big_tile_m, _round_up(pl.cdiv(M, 2), 16))

    grid = (pl.cdiv(M, tm),)  # ragged last block is masked by Pallas

    return pl.pallas_call(
        _linear_kernel,
        out_shape=jax.ShapeDtypeStruct((M, N), jnp.float32),
        grid=grid,
        in_specs=[
            # Activation tile: full K -> no reduction axis / accumulator.
            pl.BlockSpec((tm, K), lambda i: (i, 0)),
            # Whole W^T and bias are VMEM-resident with constant index maps;
            # single-buffered so they don't burn a second VMEM copy.
            pl.BlockSpec((K, N), lambda i: (0, 0), pipeline_mode=pl.Buffered(1)),
            pl.BlockSpec((1, N), lambda i: (0, 0), pipeline_mode=pl.Buffered(1)),
        ],
        out_specs=pl.BlockSpec((tm, N), lambda i: (i, 0)),
        compiler_params=pltpu.CompilerParams(
            dimension_semantics=("parallel",),
        ),
    )(x, wt, b2)


class LatentTokenDecoderPallas:
    """JAX/Pallas port of LatentTokenDecoder with deterministic init."""

    def __init__(self, token_dim=128, output_frames=6, out_channels=4,
                 size_hw=16, key=jax.random.PRNGKey(42)):
        self.token_dim = token_dim
        self.output_frames = output_frames
        self.out_channels = out_channels
        self.size_hw = size_hw
        self.num_tokens = output_frames * out_channels

        n_out = size_hw * size_hw
        kw, kb = jax.random.split(key)
        # nn.Linear default init: U(-1/sqrt(fan_in), 1/sqrt(fan_in))
        bound = 1.0 / (token_dim ** 0.5)
        self.weight = jax.random.uniform(
            kw, (n_out, token_dim), jnp.float32, -bound, bound)
        self.bias = jax.random.uniform(
            kb, (n_out,), jnp.float32, -bound, bound)

        # Hoisted layout plumbing (done once): transposed bf16 weight for the
        # MXU, f32 (1, N) bias row for the f32 epilogue.
        self.wt_bf16 = jnp.asarray(self.weight.T, dtype=jnp.bfloat16)   # (K, N)
        self.b2 = self.bias.reshape(1, n_out).astype(jnp.float32)       # (1, N)

    def __call__(self, tokens):
        # tokens: (B, T, token_dim) with T == output_frames * out_channels
        B, T, D = tokens.shape
        assert T == self.num_tokens and D == self.token_dim

        # Single bf16 cast of the activations (halves their DMA traffic).
        x2d = tokens.reshape(B * T, D).astype(jnp.bfloat16)
        y = pallas_linear(x2d, self.wt_bf16, self.b2)   # (B*T, size_hw^2) f32, lane-dense

        # The (..., H, W) view is free; keep the lane-dense (B*T, 256) layout
        # through all TPU compute and only view at the very end.
        # TODO(synk): if a downstream Pallas kernel consumes this output, fuse
        # it into _linear_kernel's epilogue instead of paying a kernel boundary.
        return y.reshape(B, self.output_frames, self.out_channels,
                         self.size_hw, self.size_hw)


if __name__ == "__main__":
    # Small, self-consistent shapes: token_dim=128, frames=6, channels=4, hw=16.
    B, token_dim, output_frames, out_channels, size_hw = 2, 128, 6, 4, 16
    num_tokens = output_frames * out_channels

    key = jax.random.PRNGKey(0)
    tokens = jax.random.normal(key, (B, num_tokens, token_dim), jnp.float32)

    model = LatentTokenDecoderPallas(
        token_dim=token_dim, output_frames=output_frames,
        out_channels=out_channels, size_hw=size_hw)

    out = jax.block_until_ready(model(tokens))
    assert out.shape == (B, output_frames, out_channels, size_hw, size_hw)

    x2d = tokens.reshape(B * num_tokens, token_dim)

    # Reference 1 (tight): same bf16-rounded operands, f32 accumulate ->
    # validates the kernel math itself.
    x_b = x2d.astype(jnp.bfloat16).astype(jnp.float32)
    w_b = model.wt_bf16.astype(jnp.float32)
    ref_bf16 = (x_b @ w_b + model.bias).reshape(out.shape)
    assert jnp.allclose(out, ref_bf16, atol=1e-3, rtol=1e-3)

    # Reference 2 (loose): full-f32 PyTorch-style Linear -> the bf16 MXU path
    # stays semantically faithful to the original module.
    ref_f32 = (x2d @ model.weight.T + model.bias).reshape(out.shape)
    assert jnp.allclose(out, ref_f32, atol=5e-2, rtol=5e-2)

    print("KERNEL_OK")
</pallas_src>

<mosaic_0001>
module attributes {stable_mosaic.version = 11 : i64} {
  func.func @_linear_kernel(%arg0: i32, %arg1: memref<48x128xbf16, #tpu.memory_space<vmem>>, %arg2: memref<128x256xbf16, #tpu.memory_space<vmem>>, %arg3: memref<1x256xf32, #tpu.memory_space<vmem>>, %arg4: memref<48x256xf32, #tpu.memory_space<vmem>>) attributes {dimension_semantics = [#tpu.dimension_semantics<parallel>], iteration_bounds = array<i64: 1>, scalar_prefetch = 0 : i64, scratch_operands = 0 : i64, tpu.core_type = #tpu.core_type<tc>, window_params = [{transform_indices = @transform_0, window_bounds = array<i64: 48, 128>}, {pipeline_mode = #tpu.pipeline_mode<synchronous>, transform_indices = @transform_1, window_bounds = array<i64: 128, 256>}, {pipeline_mode = #tpu.pipeline_mode<synchronous>, transform_indices = @transform_2, window_bounds = array<i64: 1, 256>}, {transform_indices = @transform_3, window_bounds = array<i64: 48, 256>}]} {
    %c0 = arith.constant 0 : index
    %c0_0 = arith.constant 0 : index
    %0 = vector.load %arg1[%c0, %c0_0] : memref<48x128xbf16, #tpu.memory_space<vmem>>, vector<48x128xbf16>
    %c0_1 = arith.constant 0 : index
    %c0_2 = arith.constant 0 : index
    %1 = vector.load %arg2[%c0_1, %c0_2] : memref<128x256xbf16, #tpu.memory_space<vmem>>, vector<128x256xbf16>
    %cst = arith.constant dense<0.000000e+00> : vector<48x256xf32>
    %2 = tpu.matmul %0, %1, %cst {dimension_numbers = #tpu.dot_dimension_numbers<[1], [0], [0], [1], [0, 0, 1, 1], [], []>} : vector<48x128xbf16>, vector<128x256xbf16>, vector<48x256xf32> -> vector<48x256xf32>
    %c0_3 = arith.constant 0 : index
    %c0_4 = arith.constant 0 : index
    %3 = vector.load %arg3[%c0_3, %c0_4] : memref<1x256xf32, #tpu.memory_space<vmem>>, vector<1x256xf32>
    %4 = vector.broadcast %3 : vector<1x256xf32> to vector<48x256xf32>
    %5 = arith.addf %2, %4 : vector<48x256xf32>
    %c0_5 = arith.constant 0 : index
    %c0_6 = arith.constant 0 : index
    %6 = vector.load %arg4[%c0_5, %c0_6] : memref<48x256xf32, #tpu.memory_space<vmem>>, vector<48x256xf32>
    tpu.vector_store %arg4[%c0_5, %c0_6], %5 {strides = array<i32>} : memref<48x256xf32, #tpu.memory_space<vmem>>, vector<48x256xf32>,
    return
  }
  func.func @transform_0(%arg0: i32) -> (i32, i32) {
    %c0_i32 = arith.constant 0 : i32
    %c0_i32_0 = arith.constant 0 : i32
    return %arg0, %c0_i32 : i32, i32
  }
  func.func @transform_1(%arg0: i32) -> (i32, i32) {
    %c0_i32 = arith.constant 0 : i32
    %c0_i32_0 = arith.constant 0 : i32
    %c0_i32_1 = arith.constant 0 : i32
    return %c0_i32, %c0_i32_0 : i32, i32
  }
  func.func @transform_2(%arg0: i32) -> (i32, i32) {
    %c0_i32 = arith.constant 0 : i32
    %c0_i32_0 = arith.constant 0 : i32
    %c0_i32_1 = arith.constant 0 : i32
    return %c0_i32, %c0_i32_0 : i32, i32
  }
  func.func @transform_3(%arg0: i32) -> (i32, i32) {
    %c0_i32 = arith.constant 0 : i32
    %c0_i32_0 = arith.constant 0 : i32
    return %arg0, %c0_i32 : i32, i32
  }
}

</mosaic_0001>

<llo_original>
// kernel: tpu_custom_call.1
$region0: #{tpu_custom_call.1}
  #allocation0 [shape = 'u32[]', space=smem, size = 0x4, offset = 0x4, fixed_abs, tag = 'smem constant byte address 0x4 - core index']
  #allocation1 [shape = 'u32[144,128]{1,0:T(1,128)}', space=vmem, size = 0x12000, scoped, tag = 'internal scratch']
  %s0 = inlined_call_operand.hbm [shape: bf16[48,128], index: 0, kind: input, shape index: {}]
  %s1 = inlined_call_operand.hbm [shape: bf16[128,256], index: 1, kind: input, shape index: {}]
  %s2 = inlined_call_operand.vmem [shape: f32[1,256], index: 2, kind: input, shape index: {}]
  %s3 = inlined_call_operand.hbm [shape: f32[48,256], index: 3, kind: output, shape index: {}]
  %s4 = sld [smem:[#allocation0]]
  $region30: #{tpu_custom_call.1} parent=0
    _
  %s6 = ssub.s32 1, %s4
  %s7 = scalar_select 0, %s6, %s4
  $region1: #{tpu_custom_call.1} parent=0
    #allocation2 [shape = 'u8[12288]{0}', space=vmem, size = 0x3000, scoped, tag = 'input window, operand 0, single buffered']
    #allocation3 [shape = 's32[1]{0}', space=sflag, size = 0x4, scoped, tag = 'scoped memory for tpu_custom_call.1']
    #allocation4 [shape = 's32[1]{0}', space=sflag, size = 0x4, scoped, tag = 'scoped memory for tpu_custom_call.1']
    #allocation5 [shape = 'u8[65536]{0}', space=vmem, size = 0x10000, scoped, tag = 'input window, operand 1, single buffered']
    #allocation6 [shape = 's32[1]{0}', space=sflag, size = 0x4, scoped, tag = 'scoped memory for tpu_custom_call.1']
    #allocation7 [shape = 'u8[49152]{0}', space=vmem, size = 0xc000, scoped, tag = 'output window, operand 0, single buffered']
    %8 = vsyncpa [#allocation3], 0
    %9 = vsyncpa [#allocation6], 0
    %10 = vsyncpa [#allocation4], 0
    // Predicated region
    $region2: #{tpu_custom_call.1} parent=1 // pred_check
      _
    $region3: #{tpu_custom_call.1} parent=1 // pred_check_branch
      %12 = sbr.rel (0) target = $region5
    $region4: #{tpu_custom_call.1} parent=1 // pred_region
      %s14 = ssub.s32 384, 384
      %15 = vsyncadd [#allocation3], %s14
      %s16 = sshll.u32 [#allocation2], 4
      %s17 = int_to_ptr.vmem [resolvable:$true] %s16
      %22 = dma.hbm_to_vmem [thread:$0]  %s0, 384, %s17, [#allocation3], 64, 64, 4
    $region5: #{tpu_custom_call.1} parent=1 // pred_fallthru
      _
    // Predicated region
    $region6: #{tpu_custom_call.1} parent=1 // pred_check
      _
    $region7: #{tpu_custom_call.1} parent=1 // pred_check_branch
      %24 = sbr.rel (0) target = $region9
    $region8: #{tpu_custom_call.1} parent=1 // pred_region
      %s26 = ssub.s32 2048, 2048
      %27 = vsyncadd [#allocation6], %s26
      %s28 = sshll.u32 [#allocation5], 4
      %s29 = int_to_ptr.vmem [resolvable:$true] %s28
      %34 = dma.hbm_to_vmem [thread:$0]  %s1, 2048, %s29, [#allocation6], 128, 128, 8
    $region9: #{tpu_custom_call.1} parent=1 // pred_fallthru
      _
    // Predicated region
    $region10: #{tpu_custom_call.1} parent=1 // pred_check
      _
    $region11: #{tpu_custom_call.1} parent=1 // pred_check_branch
      %36 = sbr.rel (0) target = $region13
    $region12: #{tpu_custom_call.1} parent=1 // pred_region
      _
    $region13: #{tpu_custom_call.1} parent=1 // pred_fallthru
      _
    // Predicated region
    $region14: #{tpu_custom_call.1} parent=1 // pred_check
      _
    $region15: #{tpu_custom_call.1} parent=1 // pred_check_branch
      %38 = sbr.rel (0) target = $region17
    $region16: #{tpu_custom_call.1} parent=1 // pred_region
      %39 = dma.done [#allocation3], 384
    $region17: #{tpu_custom_call.1} parent=1 // pred_fallthru
      _
    // Predicated region
    $region18: #{tpu_custom_call.1} parent=1 // pred_check
      _
    $region19: #{tpu_custom_call.1} parent=1 // pred_check_branch
      %41 = sbr.rel (0) target = $region21
    $region20: #{tpu_custom_call.1} parent=1 // pred_region
      %42 = dma.done [#allocation6], 2048
    $region21: #{tpu_custom_call.1} parent=1 // pred_fallthru
      _
    %v44 = vld [vmem:[#allocation2] sm:$0xf]
    %v45 = vld [vmem:[#allocation2 + $0x4] sm:$0xf]
    %v46 = vld [vmem:[#allocation2 + $0x8] sm:$0xf]
    %v47 = vld [vmem:[#allocation2 + $0xc] sm:$0xf]
    %v48 = vld [vmem:[#allocation2 + $0x10] sm:$0xf]
    %v49 = vld [vmem:[#allocation2 + $0x14] sm:$0xf]
    %v50 = vld [vmem:[#allocation5] sm:$0xff]
    %v51 = vld [vmem:[#allocation5 + $0x8] sm:$0xff]
    %v52 = vld [vmem:[#allocation5 + $0x10] sm:$0xff]
    %v53 = vld [vmem:[#allocation5 + $0x18] sm:$0xff]
    %v54 = vld [vmem:[#allocation5 + $0x20] sm:$0xff]
    %v55 = vld [vmem:[#allocation5 + $0x28] sm:$0xff]
    %v56 = vld [vmem:[#allocation5 + $0x30] sm:$0xff]
    %v57 = vld [vmem:[#allocation5 + $0x38] sm:$0xff]
    %v58 = vld [vmem:[#allocation5 + $0x40] sm:$0xff]
    %v59 = vld [vmem:[#allocation5 + $0x48] sm:$0xff]
    %v60 = vld [vmem:[#allocation5 + $0x50] sm:$0xff]
    %v61 = vld [vmem:[#allocation5 + $0x58] sm:$0xff]
    %v62 = vld [vmem:[#allocation5 + $0x60] sm:$0xff]
    %v63 = vld [vmem:[#allocation5 + $0x68] sm:$0xff]
    %v64 = vld [vmem:[#allocation5 + $0x70] sm:$0xff]
    %v65 = vld [vmem:[#allocation5 + $0x78] sm:$0xff]
    %v66 = vld [vmem:[%s2] sm:$0x3]
    %v68 = vlaneseq
    %v69 = vshrl.u32 %v68, 7
    %v70 = vsub.s32 0, %v69
    %v71 = vrot.slane %v66, %v70
    %v72 = vlaneseq
    %v73 = vshrl.u32 %v72, 7
    %v74 = vsub.s32 1, %v73
    %v75 = vrot.slane %v66, %v74
    %v84 = vunpack.c.l.b16 %v44
    %v85 = vunpack.c.l.b16 %v45
    %v86 = vunpack.c.l.b16 %v46
    %v87 = vunpack.c.l.b16 %v47
    %v88 = vunpack.c.l.b16 %v48
    %v89 = vunpack.c.l.b16 %v49
    %v90 = vpack.c.b16 %v85, %v84
    %v91 = vpack.c.b16 %v87, %v86
    %v92 = vpack.c.b16 %v89, %v88
    %v112 = vunpack.c.l.b16 %v50
    %v113 = vunpack.c.h.b16 %v50
    %v114 = vunpack.c.l.b16 %v51
    %v115 = vunpack.c.h.b16 %v51
    %v116 = vunpack.c.l.b16 %v52
    %v117 = vunpack.c.h.b16 %v52
    %v118 = vunpack.c.l.b16 %v53
    %v119 = vunpack.c.h.b16 %v53
    %v120 = vunpack.c.l.b16 %v54
    %v121 = vunpack.c.h.b16 %v54
    %v122 = vunpack.c.l.b16 %v55
    %v123 = vunpack.c.h.b16 %v55
    %v124 = vunpack.c.l.b16 %v56
    %v125 = vunpack.c.h.b16 %v56
    %v126 = vunpack.c.l.b16 %v57
    %v127 = vunpack.c.h.b16 %v57
    %v128 = vunpack.c.l.b16 %v58
    %v129 = vunpack.c.h.b16 %v58
    %v130 = vunpack.c.l.b16 %v59
    %v131 = vunpack.c.h.b16 %v59
    %v132 = vunpack.c.l.b16 %v60
    %v133 = vunpack.c.h.b16 %v60
    %v134 = vunpack.c.l.b16 %v61
    %v135 = vunpack.c.h.b16 %v61
    %v136 = vunpack.c.l.b16 %v62
    %v137 = vunpack.c.h.b16 %v62
    %v138 = vunpack.c.l.b16 %v63
    %v139 = vunpack.c.h.b16 %v63
    %v140 = vunpack.c.l.b16 %v64
    %v141 = vunpack.c.h.b16 %v64
    %v142 = vunpack.c.l.b16 %v65
    %v143 = vunpack.c.h.b16 %v65
    %v144 = vpack.c.b16 %v114, %v112
    %v145 = vpack.c.b16 %v115, %v113
    %v146 = vpack.c.b16 %v118, %v116
    %v147 = vpack.c.b16 %v119, %v117
    %v148 = vpack.c.b16 %v122, %v120
    %v149 = vpack.c.b16 %v123, %v121
    %v150 = vpack.c.b16 %v126, %v124
    %v151 = vpack.c.b16 %v127, %v125
    %v152 = vpack.c.b16 %v130, %v128
    %v153 = vpack.c.b16 %v131, %v129
    %v154 = vpack.c.b16 %v134, %v132
    %v155 = vpack.c.b16 %v135, %v133
    %v156 = vpack.c.b16 %v138, %v136
    %v157 = vpack.c.b16 %v139, %v137
    %v158 = vpack.c.b16 %v142, %v140
    %v159 = vpack.c.b16 %v143, %v141
    %176 = vmatprep.subr.bf16.mxu0 %v145
    %177 = vmatpush1.bf16.msra.mxu0 %v144
    %178 = vmatprep.subr.bf16.mxu0 %v147
    %179 = vmatpush1.bf16.msra.mxu0 %v146
    %180 = vmatprep.subr.bf16.mxu0 %v149
    %181 = vmatpush1.bf16.msra.mxu0 %v148
    %182 = vmatprep.subr.bf16.mxu0 %v151
    %183 = vmatpush1.bf16.msra.mxu0 %v150
    %184 = vmatprep.subr.bf16.mxu0 %v153
    %185 = vmatpush1.bf16.msra.mxu0 %v152
    %186 = vmatprep.subr.bf16.mxu0 %v155
    %187 = vmatpush1.bf16.msra.mxu0 %v154
    %188 = vmatprep.subr.bf16.mxu0 %v157
    %189 = vmatpush1.bf16.msra.mxu0 %v156
    %190 = vmatprep.subr.bf16.mxu0 %v159
    %191 = vmatpush1.bf16.msra.mxu0 %v158
    %192 = vmatprep.subr.bf16.mxu0 0
    %193 = vmatpush1.bf16.msra.mxu0 0
    %194 = vmatprep.subr.bf16.mxu0 0
    %195 = vmatpush1.bf16.msra.mxu0 0
    %196 = vmatprep.subr.bf16.mxu0 0
    %197 = vmatpush1.bf16.msra.mxu0 0
    %198 = vmatprep.subr.bf16.mxu0 0
    %199 = vmatpush1.bf16.msra.mxu0 0
    %200 = vmatprep.subr.bf16.mxu0 0
    %201 = vmatpush1.bf16.msra.mxu0 0
    %202 = vmatprep.subr.bf16.mxu0 0
    %203 = vmatpush1.bf16.msra.mxu0 0
    %204 = vmatprep.subr.bf16.mxu0 0
    %205 = vmatpush1.bf16.msra.mxu0 0
    %206 = vmatprep.subr.bf16.mxu0 0
    %207 = vmatpush1.bf16.msra.mxu0 0
    %208 = vmatprep.mubr.bf16.mxu0 0
    %209 = vmatmul.mubr.bf16.gmra.mrb[0].mxu0 %v90
    %v210 = vpop.f32.mrb[0].mxu0
    %v211 = vadd.f32 %v71, %v210
    %v212 = vpop.f32.mrb[0].mxu0
    %v213 = vadd.f32 %v75, %v212
    %v214 = vpop.f32.mrb[0].mxu0
    %v215 = vadd.f32 %v71, %v214
    %v216 = vpop.f32.mrb[0].mxu0
    %v217 = vadd.f32 %v75, %v216
    %218 = vmatprep.mubr.bf16.mxu0 0
    %219 = vmatmul.mubr.bf16.gmra.mrb[0].mxu0 %v91
    %v220 = vpop.f32.mrb[0].mxu0
    %v221 = vadd.f32 %v71, %v220
    %v222 = vpop.f32.mrb[0].mxu0
    %v223 = vadd.f32 %v75, %v222
    %v224 = vpop.f32.mrb[0].mxu0
    %v225 = vadd.f32 %v71, %v224
    %v226 = vpop.f32.mrb[0].mxu0
    %v227 = vadd.f32 %v75, %v226
    %228 = vmatprep.mubr.bf16.mxu0 0
    %229 = vmatmul.mubr.bf16.gmra.mrb[0].mxu0 %v92
    %v230 = vpop.f32.mrb[0].mxu0
    %v231 = vadd.f32 %v71, %v230
    %v232 = vpop.f32.mrb[0].mxu0
    %v233 = vadd.f32 %v75, %v232
    %v234 = vpop.f32.mrb[0].mxu0
    %v235 = vadd.f32 %v71, %v234
    %v236 = vpop.f32.mrb[0].mxu0
    %v237 = vadd.f32 %v75, %v236
    %238 = vdwg.mxu0
    %239 = vst [vmem:[#allocation7] sm:$0xff] %v211
    %240 = vst [vmem:[#allocation7 + $0x8] sm:$0xff] %v213
    %241 = vst [vmem:[#allocation7 + $0x10] sm:$0xff] %v215
    %242 = vst [vmem:[#allocation7 + $0x18] sm:$0xff] %v217
    %243 = vst [vmem:[#allocation7 + $0x20] sm:$0xff] %v221
    %244 = vst [vmem:[#allocation7 + $0x28] sm:$0xff] %v223
    %245 = vst [vmem:[#allocation7 + $0x30] sm:$0xff] %v225
    %246 = vst [vmem:[#allocation7 + $0x38] sm:$0xff] %v227
    %247 = vst [vmem:[#allocation7 + $0x40] sm:$0xff] %v231
    %248 = vst [vmem:[#allocation7 + $0x48] sm:$0xff] %v233
    %249 = vst [vmem:[#allocation7 + $0x50] sm:$0xff] %v235
    %250 = vst [vmem:[#allocation7 + $0x58] sm:$0xff] %v237
    // Predicated region
    $region22: #{tpu_custom_call.1} parent=1 // pred_check
      _
    $region23: #{tpu_custom_call.1} parent=1 // pred_check_branch
      %252 = sbr.rel (0) target = $region25
    $region24: #{tpu_custom_call.1} parent=1 // pred_region
      %s254 = ssub.s32 1536, 1536
      %255 = vsyncadd [#allocation4], %s254
      %s256 = sshll.u32 [#allocation7], 4
      %s257 = int_to_ptr.vmem [resolvable:$true] %s256
      %262 = dma.vmem_to_hbm [thread:$0]  %s257, 1536, %s3, [#allocation4], 256, 256, 16
    $region25: #{tpu_custom_call.1} parent=1 // pred_fallthru
      _
    // Predicated region
    $region26: #{tpu_custom_call.1} parent=1 // pred_check
      _
    $region27: #{tpu_custom_call.1} parent=1 // pred_check_branch
      %264 = sbr.rel (0) target = $region29
    $region28: #{tpu_custom_call.1} parent=1 // pred_region
      %265 = dma.done [#allocation4], 1536
    $region29: #{tpu_custom_call.1} parent=1 // pred_fallthru
      _
    %266 = vsyncpa [#allocation3], 1
    %267 = vsyncpa [#allocation6], 1
    %268 = vsyncpa [#allocation4], 1

</llo_original>
